<compile_context>
chip_gen: v6e
topology: v6e:2x2x1
jax: 0.10.0
libtpu: 0.0.40
codegen_flags: <defaults>
</compile_context>

<pallas_src>
import jax
import jax.numpy as jnp
from jax.experimental import pallas as pl
from jax.experimental.pallas import tpu as pltpu

HEIGHT = 6
WIDTH = 7
PIX = HEIGHT * WIDTH          # 42 input pixels
C_OUT = 4
KH = KW = 3
HIDDEN = 20
FLAT = C_OUT * HEIGHT * WIDTH  # 168 flattened conv outputs

MAX_BATCH_BLOCK = 512          # lanes per grid step (multiple of 128)
# TODO(synk): on v7x (64 MiB VMEM) cap the batch block lower (e.g. 256-1024)
# if B grows huge; at these feature sizes 512 is far below any VMEM limit.


def _round_up(n, m):
    return ((n + m - 1) // m) * m


def fused_kernel(wc_ref, bc_ref, w1_ref, b1_ref, w2_ref, b2_ref, xT_ref, out_ref):
    """Whole forward for one batch block, batch on lanes.

    wc_ref:  (168, 42)  conv-as-matrix (includes zero padding of the 3x3 conv)
    bc_ref:  (168, 1)   conv bias broadcast over spatial positions
    w1_ref:  (20, 168)  linear1 weight
    b1_ref:  (20, 1)    linear1 bias
    w2_ref:  (1, 20)    linear2 weight
    b2_ref:  (1, 1)     linear2 bias
    xT_ref:  (42, TB)   input pixels, batch block on lanes
    out_ref: (1, TB)    output, batch block on lanes
    """
    # conv(1->4, 3x3, pad=1) + relu, flattened in torch (C, H, W) order.
    flat = jnp.dot(wc_ref[...], xT_ref[...],
                   preferred_element_type=jnp.float32) + bc_ref[...]
    flat = jnp.maximum(flat, 0.0)                      # (168, TB)

    # linear1 (168 -> 20) + relu.
    h = jnp.dot(w1_ref[...], flat,
                preferred_element_type=jnp.float32) + b1_ref[...]
    h = jnp.maximum(h, 0.0)                            # (20, TB)

    # linear2 (20 -> 1), lane-dense (1, TB) result.
    out_ref[...] = jnp.dot(w2_ref[...], h,
                           preferred_element_type=jnp.float32) + b2_ref[...]


def prepare_params(params):
    """One-time parameter layout prep (hoisted out of the forward pass)."""
    w_conv, b_conv, w1, b1, w2, b2 = params

    # Conv-as-matrix: convolve the 42 unit-basis images (no bias).  Row i of
    # the (42, 168) result is the flattened conv response to pixel i; its
    # transpose maps (42, B) pixel columns -> (168, B) flattened activations.
    eye_imgs = jnp.eye(PIX, dtype=jnp.float32).reshape(PIX, 1, HEIGHT, WIDTH)
    m = jax.lax.conv_general_dilated(
        eye_imgs, w_conv, window_strides=(1, 1), padding=((1, 1), (1, 1)),
        dimension_numbers=("NCHW", "OIHW", "NCHW"))     # (42, 4, 6, 7)
    wc = m.reshape(PIX, FLAT).T                         # (168, 42)
    bc = jnp.repeat(b_conv, HEIGHT * WIDTH).reshape(FLAT, 1)  # (168, 1)

    return (
        wc.astype(jnp.float32),
        bc.astype(jnp.float32),
        w1.astype(jnp.float32),                  # (20, 168)
        b1.reshape(HIDDEN, 1).astype(jnp.float32),
        w2.astype(jnp.float32),                  # (1, 20)
        b2.reshape(1, 1).astype(jnp.float32),
    )


def demo_forward(x, prepped):
    wc, bc, w1, b1, w2, b2 = prepped
    B = x.shape[0]

    # Batch-on-lanes layout: (42, B), padded so the lane dim tiles cleanly.
    xT = x.reshape(B, PIX).T                       # (42, B)
    tb = min(MAX_BATCH_BLOCK, _round_up(B, 128))   # batch block (lanes)
    bp = _round_up(B, tb)
    if bp != B:
        xT = jnp.pad(xT, ((0, 0), (0, bp - B)))
    grid = (bp // tb,)

    out = pl.pallas_call(
        fused_kernel,
        grid=grid,
        in_specs=[
            pl.BlockSpec((FLAT, PIX), lambda i: (0, 0)),     # conv matrix
            pl.BlockSpec((FLAT, 1), lambda i: (0, 0)),       # conv bias
            pl.BlockSpec((HIDDEN, FLAT), lambda i: (0, 0)),  # w1
            pl.BlockSpec((HIDDEN, 1), lambda i: (0, 0)),     # b1
            pl.BlockSpec((1, HIDDEN), lambda i: (0, 0)),     # w2
            pl.BlockSpec((1, 1), lambda i: (0, 0)),          # b2
            pl.BlockSpec((PIX, tb), lambda i: (0, i)),       # x^T batch block
        ],
        out_specs=pl.BlockSpec((1, tb), lambda i: (0, i)),
        out_shape=jax.ShapeDtypeStruct((1, bp), jnp.float32),
        compiler_params=pltpu.CompilerParams(
            dimension_semantics=("parallel",)),
    )(wc, bc, w1, b1, w2, b6_placeholder := b2, xT)

    return out[:, :B].T                            # (B, 1)


def reference(x, params):
    """Plain-JAX reference mirroring the PyTorch forward."""
    w_conv, b_conv, w1, b1, w2, b2 = params
    y = jax.lax.conv_general_dilated(
        x, w_conv, window_strides=(1, 1), padding=((1, 1), (1, 1)),
        dimension_numbers=("NCHW", "OIHW", "NCHW"))
    y = jax.nn.relu(y + b_conv.reshape(1, -1, 1, 1))
    y = y.reshape(x.shape[0], -1)
    y = jax.nn.relu(y @ w1.T + b1)
    return y @ w2.T + b2


def init_params(key):
    ks = jax.random.split(key, 6)
    # Deterministic, PyTorch-default-style uniform init (bounds = 1/sqrt(fan_in)).
    b_conv_lim = 1.0 / (1 * KH * KW) ** 0.5
    w_conv = jax.random.uniform(ks[0], (C_OUT, 1, KH, KW), jnp.float32, -b_conv_lim, b_conv_lim)
    b_conv = jax.random.uniform(ks[1], (C_OUT,), jnp.float32, -b_conv_lim, b_conv_lim)
    l1_lim = 1.0 / FLAT ** 0.5
    w1 = jax.random.uniform(ks[2], (HIDDEN, FLAT), jnp.float32, -l1_lim, l1_lim)
    b1 = jax.random.uniform(ks[3], (HIDDEN,), jnp.float32, -l1_lim, l1_lim)
    l2_lim = 1.0 / HIDDEN ** 0.5
    w2 = jax.random.uniform(ks[4], (1, HIDDEN), jnp.float32, -l2_lim, l2_lim)
    b2 = jax.random.uniform(ks[5], (1,), jnp.float32, -l2_lim, l2_lim)
    return (w_conv, b_conv, w1, b1, w2, b2)


if __name__ == "__main__":
    key = jax.random.PRNGKey(0)
    pkey, xkey1, xkey2 = jax.random.split(key, 3)
    params = init_params(pkey)
    prepped = jax.block_until_ready(prepare_params(params))  # hoisted, done once

    fwd = jax.jit(demo_forward)

    # Small batch (matches the module spec).
    B = 2
    x = jax.random.normal(xkey1, (B, 1, HEIGHT, WIDTH), jnp.float32)
    out = jax.block_until_ready(fwd(x, prepped))
    ref = reference(x, params)
    assert out.shape == (B, 1), out.shape
    assert jnp.allclose(out, ref, atol=1e-4, rtol=1e-4), (out, ref)

    # Larger batch exercising the batch-tiled grid + lane padding path.
    B2 = 600
    x2 = jax.random.normal(xkey2, (B2, 1, HEIGHT, WIDTH), jnp.float32)
    out2 = jax.block_until_ready(fwd(x2, prepped))
    ref2 = reference(x2, params)
    assert out2.shape == (B2, 1), out2.shape
    assert jnp.allclose(out2, ref2, atol=1e-4, rtol=1e-4)

    print("KERNEL_OK")
</pallas_src>

<mosaic_0001>
module attributes {stable_mosaic.version = 11 : i64} {
  func.func @fused_kernel(%arg0: i32, %arg1: memref<168x42xf32, #tpu.memory_space<vmem>>, %arg2: memref<168x1xf32, #tpu.memory_space<vmem>>, %arg3: memref<20x168xf32, #tpu.memory_space<vmem>>, %arg4: memref<20x1xf32, #tpu.memory_space<vmem>>, %arg5: memref<1x20xf32, #tpu.memory_space<vmem>>, %arg6: memref<1x1xf32, #tpu.memory_space<vmem>>, %arg7: memref<42x128xf32, #tpu.memory_space<vmem>>, %arg8: memref<1x128xf32, #tpu.memory_space<vmem>>) attributes {dimension_semantics = [#tpu.dimension_semantics<parallel>], iteration_bounds = array<i64: 1>, scalar_prefetch = 0 : i64, scratch_operands = 0 : i64, tpu.core_type = #tpu.core_type<tc>, window_params = [{pipeline_mode = #tpu.pipeline_mode<synchronous>, transform_indices = @transform_0, window_bounds = array<i64: 168, 42>}, {pipeline_mode = #tpu.pipeline_mode<synchronous>, transform_indices = @transform_1, window_bounds = array<i64: 168, 1>}, {pipeline_mode = #tpu.pipeline_mode<synchronous>, transform_indices = @transform_2, window_bounds = array<i64: 20, 168>}, {pipeline_mode = #tpu.pipeline_mode<synchronous>, transform_indices = @transform_3, window_bounds = array<i64: 20, 1>}, {pipeline_mode = #tpu.pipeline_mode<synchronous>, transform_indices = @transform_4, window_bounds = array<i64: 1, 20>}, {pipeline_mode = #tpu.pipeline_mode<synchronous>, transform_indices = @transform_5, window_bounds = array<i64: 1, 1>}, {transform_indices = @transform_6, window_bounds = array<i64: 42, 128>}, {transform_indices = @transform_7, window_bounds = array<i64: 1, 128>}]} {
    %c0 = arith.constant 0 : index
    %c0_0 = arith.constant 0 : index
    %0 = vector.load %arg1[%c0, %c0_0] : memref<168x42xf32, #tpu.memory_space<vmem>>, vector<168x42xf32>
    %c0_1 = arith.constant 0 : index
    %c0_2 = arith.constant 0 : index
    %1 = vector.load %arg7[%c0_1, %c0_2] : memref<42x128xf32, #tpu.memory_space<vmem>>, vector<42x128xf32>
    %cst = arith.constant dense<0.000000e+00> : vector<168x128xf32>
    %2 = tpu.matmul %0, %1, %cst {dimension_numbers = #tpu.dot_dimension_numbers<[1], [0], [0], [1], [0, 0, 1, 1], [], []>} : vector<168x42xf32>, vector<42x128xf32>, vector<168x128xf32> -> vector<168x128xf32>
    %c0_3 = arith.constant 0 : index
    %c0_4 = arith.constant 0 : index
    %3 = vector.load %arg2[%c0_3, %c0_4] : memref<168x1xf32, #tpu.memory_space<vmem>>, vector<168x1xf32>
    %4 = vector.broadcast %3 : vector<168x1xf32> to vector<168x128xf32>
    %5 = arith.addf %2, %4 : vector<168x128xf32>
    %cst_5 = arith.constant 0.000000e+00 : f32
    %6 = vector.broadcast %cst_5 : f32 to vector<168x128xf32>
    %7 = arith.maximumf %5, %6 : vector<168x128xf32>
    %c0_6 = arith.constant 0 : index
    %c0_7 = arith.constant 0 : index
    %8 = vector.load %arg3[%c0_6, %c0_7] : memref<20x168xf32, #tpu.memory_space<vmem>>, vector<20x168xf32>
    %cst_8 = arith.constant dense<0.000000e+00> : vector<20x128xf32>
    %9 = tpu.matmul %8, %7, %cst_8 {dimension_numbers = #tpu.dot_dimension_numbers<[1], [0], [0], [1], [0, 0, 1, 1], [], []>} : vector<20x168xf32>, vector<168x128xf32>, vector<20x128xf32> -> vector<20x128xf32>
    %c0_9 = arith.constant 0 : index
    %c0_10 = arith.constant 0 : index
    %10 = vector.load %arg4[%c0_9, %c0_10] : memref<20x1xf32, #tpu.memory_space<vmem>>, vector<20x1xf32>
    %11 = vector.broadcast %10 : vector<20x1xf32> to vector<20x128xf32>
    %12 = arith.addf %9, %11 : vector<20x128xf32>
    %cst_11 = arith.constant 0.000000e+00 : f32
    %13 = vector.broadcast %cst_11 : f32 to vector<20x128xf32>
    %14 = arith.maximumf %12, %13 : vector<20x128xf32>
    %c0_12 = arith.constant 0 : index
    %c0_13 = arith.constant 0 : index
    %15 = vector.load %arg5[%c0_12, %c0_13] : memref<1x20xf32, #tpu.memory_space<vmem>>, vector<1x20xf32>
    %cst_14 = arith.constant dense<0.000000e+00> : vector<1x128xf32>
    %16 = tpu.matmul %15, %14, %cst_14 {dimension_numbers = #tpu.dot_dimension_numbers<[1], [0], [0], [1], [0, 0, 1, 1], [], []>} : vector<1x20xf32>, vector<20x128xf32>, vector<1x128xf32> -> vector<1x128xf32>
    %c0_15 = arith.constant 0 : index
    %c0_16 = arith.constant 0 : index
    %17 = vector.load %arg6[%c0_15, %c0_16] : memref<1x1xf32, #tpu.memory_space<vmem>>, vector<1x1xf32>
    %18 = vector.broadcast %17 : vector<1x1xf32> to vector<1x128xf32>
    %19 = arith.addf %16, %18 : vector<1x128xf32>
    %c0_17 = arith.constant 0 : index
    %c0_18 = arith.constant 0 : index
    %20 = vector.load %arg8[%c0_17, %c0_18] : memref<1x128xf32, #tpu.memory_space<vmem>>, vector<1x128xf32>
    tpu.vector_store %arg8[%c0_17, %c0_18], %19 {strides = array<i32>} : memref<1x128xf32, #tpu.memory_space<vmem>>, vector<1x128xf32>,
    return
  }
  func.func @transform_0(%arg0: i32) -> (i32, i32) {
    %c0_i32 = arith.constant 0 : i32
    %c0_i32_0 = arith.constant 0 : i32
    %c0_i32_1 = arith.constant 0 : i32
    return %c0_i32, %c0_i32_0 : i32, i32
  }
  func.func @transform_1(%arg0: i32) -> (i32, i32) {
    %c0_i32 = arith.constant 0 : i32
    %c0_i32_0 = arith.constant 0 : i32
    %c0_i32_1 = arith.constant 0 : i32
    return %c0_i32, %c0_i32_0 : i32, i32
  }
  func.func @transform_2(%arg0: i32) -> (i32, i32) {
    %c0_i32 = arith.constant 0 : i32
    %c0_i32_0 = arith.constant 0 : i32
    %c0_i32_1 = arith.constant 0 : i32
    return %c0_i32, %c0_i32_0 : i32, i32
  }
  func.func @transform_3(%arg0: i32) -> (i32, i32) {
    %c0_i32 = arith.constant 0 : i32
    %c0_i32_0 = arith.constant 0 : i32
    %c0_i32_1 = arith.constant 0 : i32
    return %c0_i32, %c0_i32_0 : i32, i32
  }
  func.func @transform_4(%arg0: i32) -> (i32, i32) {
    %c0_i32 = arith.constant 0 : i32
    %c0_i32_0 = arith.constant 0 : i32
    %c0_i32_1 = arith.constant 0 : i32
    return %c0_i32, %c0_i32_0 : i32, i32
  }
  func.func @transform_5(%arg0: i32) -> (i32, i32) {
    %c0_i32 = arith.constant 0 : i32
    %c0_i32_0 = arith.constant 0 : i32
    %c0_i32_1 = arith.constant 0 : i32
    return %c0_i32, %c0_i32_0 : i32, i32
  }
  func.func @transform_6(%arg0: i32) -> (i32, i32) {
    %c0_i32 = arith.constant 0 : i32
    %c0_i32_0 = arith.constant 0 : i32
    return %c0_i32, %arg0 : i32, i32
  }
  func.func @transform_7(%arg0: i32) -> (i32, i32) {
    %c0_i32 = arith.constant 0 : i32
    %c0_i32_0 = arith.constant 0 : i32
    return %c0_i32, %arg0 : i32, i32
  }
}

</mosaic_0001>

<llo_original>
// kernel: demo_forward.1
$region0: #{demo_forward.1}
  #allocation0 [shape = 'u32[]', space=smem, size = 0x4, offset = 0x4, fixed_abs, tag = 'smem constant byte address 0x4 - core index']
  #allocation1 [shape = 'u32[144,128]{1,0:T(1,128)}', space=vmem, size = 0x12000, scoped, tag = 'internal scratch']
  #allocation2 [shape = 'f32[1,1]{1,0:T(1,128)S(1)}', space=vmem, size = 0x200, scoped, tag = 'scoped memory for demo_forward.1']
  %s0 = inlined_call_operand.vmem [shape: f32[168,42], index: 0, kind: input, shape index: {}]
  %s1 = inlined_call_operand.vmem [shape: f32[168,1], index: 1, kind: input, shape index: {}]
  %s2 = inlined_call_operand.vmem [shape: f32[20,168], index: 2, kind: input, shape index: {}]
  %s3 = inlined_call_operand.vmem [shape: f32[20,1], index: 3, kind: input, shape index: {}]
  %s4 = inlined_call_operand.vmem [shape: f32[1,20], index: 4, kind: input, shape index: {}]
  %s5 = inlined_call_operand.<no memory space> [shape: f32[1,1], index: 5, kind: input, shape index: {}]
  %s6 = inlined_call_operand.vmem [shape: f32[42,128], index: 6, kind: input, shape index: {}]
  %s7 = inlined_call_operand.vmem [shape: f32[1,128], index: 7, kind: output, shape index: {}]
  %s8 = sld [smem:[#allocation0]]
  $region38: #{demo_forward.1} parent=0
    _
  %s10 = ssub.s32 1, %s8
  %s11 = scalar_select 0, %s10, %s8
  %v12 = vstv %s5
  %13 = vst [vmem:[#allocation2] sm:$0x1] %v12
  // Predicated region
  $region2: #{demo_forward.1} parent=0 // pred_check
    _
  $region3: #{demo_forward.1} parent=0 // pred_check_branch
    %15 = sbr.rel (0) target = $region5
  $region4: #{demo_forward.1} parent=0 // pred_region
    _
  $region5: #{demo_forward.1} parent=0 // pred_fallthru
    _
  // Predicated region
  $region6: #{demo_forward.1} parent=0 // pred_check
    _
  $region7: #{demo_forward.1} parent=0 // pred_check_branch
    %17 = sbr.rel (0) target = $region9
  $region8: #{demo_forward.1} parent=0 // pred_region
    _
  $region9: #{demo_forward.1} parent=0 // pred_fallthru
    _
  // Predicated region
  $region10: #{demo_forward.1} parent=0 // pred_check
    _
  $region11: #{demo_forward.1} parent=0 // pred_check_branch
    %19 = sbr.rel (0) target = $region13
  $region12: #{demo_forward.1} parent=0 // pred_region
    _
  $region13: #{demo_forward.1} parent=0 // pred_fallthru
    _
  // Predicated region
  $region14: #{demo_forward.1} parent=0 // pred_check
    _
  $region15: #{demo_forward.1} parent=0 // pred_check_branch
    %21 = sbr.rel (0) target = $region17
  $region16: #{demo_forward.1} parent=0 // pred_region
    _
  $region17: #{demo_forward.1} parent=0 // pred_fallthru
    _
  // Predicated region
  $region18: #{demo_forward.1} parent=0 // pred_check
    _
  $region19: #{demo_forward.1} parent=0 // pred_check_branch
    %23 = sbr.rel (0) target = $region21
  $region20: #{demo_forward.1} parent=0 // pred_region
    _
  $region21: #{demo_forward.1} parent=0 // pred_fallthru
    _
  // Predicated region
  $region22: #{demo_forward.1} parent=0 // pred_check
    _
  $region23: #{demo_forward.1} parent=0 // pred_check_branch
    %25 = sbr.rel (0) target = $region25
  $region24: #{demo_forward.1} parent=0 // pred_region
    _
  $region25: #{demo_forward.1} parent=0 // pred_fallthru
    _
  // Predicated region
  $region26: #{demo_forward.1} parent=0 // pred_check
    _
  $region27: #{demo_forward.1} parent=0 // pred_check_branch
    %27 = sbr.rel (0) target = $region29
  $region28: #{demo_forward.1} parent=0 // pred_region
    _
  $region29: #{demo_forward.1} parent=0 // pred_fallthru
    _
  %v28 = vld [vmem:[%s0] sm:$0xff]
  %v29 = vld [vmem:[%s0 + $0x8] sm:$0xff]
  %v30 = vld [vmem:[%s0 + $0x10] sm:$0xff]
  %v31 = vld [vmem:[%s0 + $0x18] sm:$0xff]
  %v32 = vld [vmem:[%s0 + $0x20] sm:$0xff]
  %v33 = vld [vmem:[%s0 + $0x28] sm:$0xff]
  %v34 = vld [vmem:[%s0 + $0x30] sm:$0xff]
  %v35 = vld [vmem:[%s0 + $0x38] sm:$0xff]
  %v36 = vld [vmem:[%s0 + $0x40] sm:$0xff]
  %v37 = vld [vmem:[%s0 + $0x48] sm:$0xff]
  %v38 = vld [vmem:[%s0 + $0x50] sm:$0xff]
  %v39 = vld [vmem:[%s0 + $0x58] sm:$0xff]
  %v40 = vld [vmem:[%s0 + $0x60] sm:$0xff]
  %v41 = vld [vmem:[%s0 + $0x68] sm:$0xff]
  %v42 = vld [vmem:[%s0 + $0x70] sm:$0xff]
  %v43 = vld [vmem:[%s0 + $0x78] sm:$0xff]
  %v44 = vld [vmem:[%s0 + $0x80] sm:$0xff]
  %v45 = vld [vmem:[%s0 + $0x88] sm:$0xff]
  %v46 = vld [vmem:[%s0 + $0x90] sm:$0xff]
  %v47 = vld [vmem:[%s0 + $0x98] sm:$0xff]
  %v48 = vld [vmem:[%s0 + $0xa0] sm:$0xff]
  %v49 = vld [vmem:[%s6] sm:$0xff]
  %v50 = vld [vmem:[%s6 + $0x8] sm:$0xff]
  %v51 = vld [vmem:[%s6 + $0x10] sm:$0xff]
  %v52 = vld [vmem:[%s6 + $0x18] sm:$0xff]
  %v53 = vld [vmem:[%s6 + $0x20] sm:$0xff]
  %v54 = vld [vmem:[%s6 + $0x28] sm:$0x3]
  %v55 = vld [vmem:[%s1] sm:$0xff]
  %v56 = vld [vmem:[%s1 + $0x8] sm:$0xff]
  %v57 = vld [vmem:[%s1 + $0x10] sm:$0xff]
  %v58 = vld [vmem:[%s1 + $0x18] sm:$0xff]
  %v59 = vld [vmem:[%s1 + $0x20] sm:$0xff]
  %v60 = vld [vmem:[%s1 + $0x28] sm:$0xff]
  %v61 = vld [vmem:[%s1 + $0x30] sm:$0xff]
  %v62 = vld [vmem:[%s1 + $0x38] sm:$0xff]
  %v63 = vld [vmem:[%s1 + $0x40] sm:$0xff]
  %v64 = vld [vmem:[%s1 + $0x48] sm:$0xff]
  %v65 = vld [vmem:[%s1 + $0x50] sm:$0xff]
  %v66 = vld [vmem:[%s1 + $0x58] sm:$0xff]
  %v67 = vld [vmem:[%s1 + $0x60] sm:$0xff]
  %v68 = vld [vmem:[%s1 + $0x68] sm:$0xff]
  %v69 = vld [vmem:[%s1 + $0x70] sm:$0xff]
  %v70 = vld [vmem:[%s1 + $0x78] sm:$0xff]
  %v71 = vld [vmem:[%s1 + $0x80] sm:$0xff]
  %v72 = vld [vmem:[%s1 + $0x88] sm:$0xff]
  %v73 = vld [vmem:[%s1 + $0x90] sm:$0xff]
  %v74 = vld [vmem:[%s1 + $0x98] sm:$0xff]
  %v75 = vld [vmem:[%s1 + $0xa0] sm:$0xff]
  %77 = vset.pattern.permute.xlu0 0
  %78 = vperm.xlu0 %77, %v55
  %v79 = vpop.permute.xlu0 %78
  %82 = vset.pattern.permute.xlu0 0
  %83 = vperm.xlu0 %82, %v56
  %v84 = vpop.permute.xlu0 %83
  %87 = vset.pattern.permute.xlu0 0
  %88 = vperm.xlu0 %87, %v57
  %v89 = vpop.permute.xlu0 %88
  %92 = vset.pattern.permute.xlu0 0
  %93 = vperm.xlu0 %92, %v58
  %v94 = vpop.permute.xlu0 %93
  %97 = vset.pattern.permute.xlu0 0
  %98 = vperm.xlu0 %97, %v59
  %v99 = vpop.permute.xlu0 %98
  %102 = vset.pattern.permute.xlu0 0
  %103 = vperm.xlu0 %102, %v60
  %v104 = vpop.permute.xlu0 %103
  %107 = vset.pattern.permute.xlu0 0
  %108 = vperm.xlu0 %107, %v61
  %v109 = vpop.permute.xlu0 %108
  %112 = vset.pattern.permute.xlu0 0
  %113 = vperm.xlu0 %112, %v62
  %v114 = vpop.permute.xlu0 %113
  %117 = vset.pattern.permute.xlu0 0
  %118 = vperm.xlu0 %117, %v63
  %v119 = vpop.permute.xlu0 %118
  %122 = vset.pattern.permute.xlu0 0
  %123 = vperm.xlu0 %122, %v64
  %v124 = vpop.permute.xlu0 %123
  %127 = vset.pattern.permute.xlu0 0
  %128 = vperm.xlu0 %127, %v65
  %v129 = vpop.permute.xlu0 %128
  %132 = vset.pattern.permute.xlu0 0
  %133 = vperm.xlu0 %132, %v66
  %v134 = vpop.permute.xlu0 %133
  %137 = vset.pattern.permute.xlu0 0
  %138 = vperm.xlu0 %137, %v67
  %v139 = vpop.permute.xlu0 %138
  %142 = vset.pattern.permute.xlu0 0
  %143 = vperm.xlu0 %142, %v68
  %v144 = vpop.permute.xlu0 %143
  %147 = vset.pattern.permute.xlu0 0
  %148 = vperm.xlu0 %147, %v69
  %v149 = vpop.permute.xlu0 %148
  %152 = vset.pattern.permute.xlu0 0
  %153 = vperm.xlu0 %152, %v70
  %v154 = vpop.permute.xlu0 %153
  %157 = vset.pattern.permute.xlu0 0
  %158 = vperm.xlu0 %157, %v71
  %v159 = vpop.permute.xlu0 %158
  %162 = vset.pattern.permute.xlu0 0
  %163 = vperm.xlu0 %162, %v72
  %v164 = vpop.permute.xlu0 %163
  %167 = vset.pattern.permute.xlu0 0
  %168 = vperm.xlu0 %167, %v73
  %v169 = vpop.permute.xlu0 %168
  %172 = vset.pattern.permute.xlu0 0
  %173 = vperm.xlu0 %172, %v74
  %v174 = vpop.permute.xlu0 %173
  %177 = vset.pattern.permute.xlu0 0
  %178 = vperm.xlu0 %177, %v75
  %v179 = vpop.permute.xlu0 %178
  %vm181 = vcmask 343040
  %v183 = vsel %vm181, %v28, 0
  %v186 = vsel %vm181, %v29, 0
  %v189 = vsel %vm181, %v30, 0
  %v192 = vsel %vm181, %v31, 0
  %v195 = vsel %vm181, %v32, 0
  %v198 = vsel %vm181, %v33, 0
  %v201 = vsel %vm181, %v34, 0
  %v204 = vsel %vm181, %v35, 0
  %v207 = vsel %vm181, %v36, 0
  %v210 = vsel %vm181, %v37, 0
  %v213 = vsel %vm181, %v38, 0
  %v216 = vsel %vm181, %v39, 0
  %v219 = vsel %vm181, %v40, 0
  %v222 = vsel %vm181, %v41, 0
  %v225 = vsel %vm181, %v42, 0
  %v228 = vsel %vm181, %v43, 0
  %v231 = vsel %vm181, %v44, 0
  %v234 = vsel %vm181, %v45, 0
  %v237 = vsel %vm181, %v46, 0
  %v240 = vsel %vm181, %v47, 0
  %v243 = vsel %vm181, %v48, 0
  %vm245 = vcmask 1041408
  %v247 = vsel %vm245, %v54, 0
  %249 = vmatprep.subr.mxu0 0.0
  %250 = vmatpush1.msra.mxu0 0.0
  %251 = vmatprep.subr.mxu0 0.0
  %252 = vmatpush1.msra.mxu0 0.0
  %253 = vmatprep.subr.mxu0 0.0
  %254 = vmatpush1.msra.mxu0 0.0
  %255 = vmatprep.subr.mxu0 0.0
  %256 = vmatpush1.msra.mxu0 0.0
  %257 = vmatprep.subr.mxu0 0.0
  %258 = vmatpush1.msra.mxu0 0.0
  %259 = vmatprep.subr.mxu0 0.0
  %260 = vmatpush1.msra.mxu0 0.0
  %261 = vmatprep.subr.mxu0 0.0
  %262 = vmatpush1.msra.mxu0 0.0
  %263 = vmatprep.subr.mxu0 0.0
  %264 = vmatpush1.msra.mxu0 0.0
  %265 = vmatprep.subr.mxu0 0.0
  %266 = vmatpush1.msra.mxu0 0.0
  %267 = vmatprep.subr.mxu0 0.0
  %268 = vmatpush1.msra.mxu0 0.0
  %269 = vmatprep.subr.mxu0 0.0
  %270 = vmatpush1.msra.mxu0 %v247
  %271 = vmatprep.subr.mxu0 0.0
  %272 = vmatpush1.msra.mxu0 %v53
  %273 = vmatprep.subr.mxu0 0.0
  %274 = vmatpush1.msra.mxu0 %v52
  %275 = vmatprep.subr.mxu0 0.0
  %276 = vmatpush1.msra.mxu0 %v51
  %277 = vmatprep.subr.mxu0 0.0
  %278 = vmatpush1.msra.mxu0 %v50
  %279 = vmatprep.subr.mxu0 0.0
  %280 = vmatpush1.msra.mxu0 %v49
  %281 = vmatprep.subr.mxu0 0.0
  %282 = vmatpush2.msra.mxu0 0.0
  %283 = vmatprep.subr.mxu0 0.0
  %284 = vmatpush2.msra.mxu0 0.0
  %285 = vmatprep.subr.mxu0 0.0
  %286 = vmatpush2.msra.mxu0 0.0
  %287 = vmatprep.subr.mxu0 0.0
  %288 = vmatpush2.msra.mxu0 0.0
  %289 = vmatprep.subr.mxu0 0.0
  %290 = vmatpush2.msra.mxu0 0.0
  %291 = vmatprep.subr.mxu0 0.0
  %292 = vmatpush2.msra.mxu0 0.0
  %293 = vmatprep.subr.mxu0 0.0
  %294 = vmatpush2.msra.mxu0 0.0
  %295 = vmatprep.subr.mxu0 0.0
  %296 = vmatpush2.msra.mxu0 0.0
  %297 = vmatprep.subr.mxu0 0.0
  %298 = vmatpush2.msra.mxu0 0.0
  %299 = vmatprep.subr.mxu0 0.0
  %300 = vmatpush2.msra.mxu0 0.0
  %301 = vmatprep.subr.mxu0 0.0
  %302 = vmatpush2.msra.mxu0 0.0
  %303 = vmatprep.subr.mxu0 0.0
  %304 = vmatpush2.msra.mxu0 0.0
  %305 = vmatprep.subr.mxu0 0.0
  %306 = vmatpush2.msra.mxu0 0.0
  %307 = vmatprep.subr.mxu0 0.0
  %308 = vmatpush2.msra.mxu0 0.0
  %309 = vmatprep.subr.mxu0 0.0
  %310 = vmatpush2.msra.mxu0 0.0
  %311 = vmatprep.subr.mxu0 0.0
  %312 = vmatpush2.msra.mxu0 0.0
  %313 = vmatprep.mubr.f32.mxu0 0.0
  %314 = vmatmul.mubr.f32.gmra.mxu0 %v183
  %v315 = vpop.f32.mrf.mxu0
  %v316 = vadd.f32 %v79, %v315
  %v317 = vpop.f32.mrf.mxu0
  %318 = vmatprep.mubr.f32.mxu0 0.0
  %319 = vmatmul.mubr.f32.gmra.mxu0 %v186
  %v320 = vpop.f32.mrf.mxu0
  %v321 = vadd.f32 %v84, %v320
  %v322 = vpop.f32.mrf.mxu0
  %323 = vmatprep.mubr.f32.mxu0 0.0
  %324 = vmatmul.mubr.f32.gmra.mxu0 %v189
  %v325 = vpop.f32.mrf.mxu0
  %v326 = vadd.f32 %v89, %v325
  %v327 = vpop.f32.mrf.mxu0
  %328 = vmatprep.mubr.f32.mxu0 0.0
  %329 = vmatmul.mubr.f32.gmra.mxu0 %v192
  %v330 = vpop.f32.mrf.mxu0
  %v331 = vadd.f32 %v94, %v330
  %v332 = vpop.f32.mrf.mxu0
  %333 = vmatprep.mubr.f32.mxu0 0.0
  %334 = vmatmul.mubr.f32.gmra.mxu0 %v195
  %v335 = vpop.f32.mrf.mxu0
  %v336 = vadd.f32 %v99, %v335
  %v337 = vpop.f32.mrf.mxu0
  %338 = vmatprep.mubr.f32.mxu0 0.0
  %339 = vmatmul.mubr.f32.gmra.mxu0 %v198
  %v340 = vpop.f32.mrf.mxu0
  %v341 = vadd.f32 %v104, %v340
  %v342 = vpop.f32.mrf.mxu0
  %343 = vmatprep.mubr.f32.mxu0 0.0
  %344 = vmatmul.mubr.f32.gmra.mxu0 %v201
  %v345 = vpop.f32.mrf.mxu0
  %v346 = vadd.f32 %v109, %v345
  %v347 = vpop.f32.mrf.mxu0
  %348 = vmatprep.mubr.f32.mxu0 0.0
  %349 = vmatmul.mubr.f32.gmra.mxu0 %v204
  %v350 = vpop.f32.mrf.mxu0
  %v351 = vadd.f32 %v114, %v350
  %v352 = vpop.f32.mrf.mxu0
  %353 = vmatprep.mubr.f32.mxu0 0.0
  %354 = vmatmul.mubr.f32.gmra.mxu0 %v207
  %v355 = vpop.f32.mrf.mxu0
  %v356 = vadd.f32 %v119, %v355
  %v357 = vpop.f32.mrf.mxu0
  %358 = vmatprep.mubr.f32.mxu0 0.0
  %359 = vmatmul.mubr.f32.gmra.mxu0 %v210
  %v360 = vpop.f32.mrf.mxu0
  %v361 = vadd.f32 %v124, %v360
  %v362 = vpop.f32.mrf.mxu0
  %363 = vmatprep.mubr.f32.mxu0 0.0
  %364 = vmatmul.mubr.f32.gmra.mxu0 %v213
  %v365 = vpop.f32.mrf.mxu0
  %v366 = vadd.f32 %v129, %v365
  %v367 = vpop.f32.mrf.mxu0
  %368 = vmatprep.mubr.f32.mxu0 0.0
  %369 = vmatmul.mubr.f32.gmra.mxu0 %v216
  %v370 = vpop.f32.mrf.mxu0
  %v371 = vadd.f32 %v134, %v370
  %v372 = vpop.f32.mrf.mxu0
  %373 = vmatprep.mubr.f32.mxu0 0.0
  %374 = vmatmul.mubr.f32.gmra.mxu0 %v219
  %v375 = vpop.f32.mrf.mxu0
  %v376 = vadd.f32 %v139, %v375
  %v377 = vpop.f32.mrf.mxu0
  %378 = vmatprep.mubr.f32.mxu0 0.0
  %379 = vmatmul.mubr.f32.gmra.mxu0 %v222
  %v380 = vpop.f32.mrf.mxu0
  %v381 = vadd.f32 %v144, %v380
  %v382 = vpop.f32.mrf.mxu0
  %383 = vmatprep.mubr.f32.mxu0 0.0
  %384 = vmatmul.mubr.f32.gmra.mxu0 %v225
  %v385 = vpop.f32.mrf.mxu0
  %v386 = vadd.f32 %v149, %v385
  %v387 = vpop.f32.mrf.mxu0
  %388 = vmatprep.mubr.f32.mxu0 0.0
  %389 = vmatmul.mubr.f32.gmra.mxu0 %v228
  %v390 = vpop.f32.mrf.mxu0
  %v391 = vadd.f32 %v154, %v390
  %v392 = vpop.f32.mrf.mxu0
  %393 = vmatprep.mubr.f32.mxu0 0.0
  %394 = vmatmul.mubr.f32.gmra.mxu0 %v231
  %v395 = vpop.f32.mrf.mxu0
  %v396 = vadd.f32 %v159, %v395
  %v397 = vpop.f32.mrf.mxu0
  %398 = vmatprep.mubr.f32.mxu0 0.0
  %399 = vmatmul.mubr.f32.gmra.mxu0 %v234
  %v400 = vpop.f32.mrf.mxu0
  %v401 = vadd.f32 %v164, %v400
  %v402 = vpop.f32.mrf.mxu0
  %403 = vmatprep.mubr.f32.mxu0 0.0
  %404 = vmatmul.mubr.f32.gmra.mxu0 %v237
  %v405 = vpop.f32.mrf.mxu0
  %v406 = vadd.f32 %v169, %v405
  %v407 = vpop.f32.mrf.mxu0
  %408 = vmatprep.mubr.f32.mxu0 0.0
  %409 = vmatmul.mubr.f32.gmra.mxu0 %v240
  %v410 = vpop.f32.mrf.mxu0
  %v411 = vadd.f32 %v174, %v410
  %v412 = vpop.f32.mrf.mxu0
  %413 = vmatprep.mubr.f32.mxu0 0.0
  %414 = vmatmul.mubr.f32.gmra.mxu0 %v243
  %v415 = vpop.f32.mrf.mxu0
  %v416 = vadd.f32 %v179, %v415
  %v417 = vpop.f32.mrf.mxu0
  %418 = vdwg.mxu0
  %v419 = vmax.f32 %v316, 0.0
  %v420 = vmax.f32 %v321, 0.0
  %v421 = vmax.f32 %v326, 0.0
  %v422 = vmax.f32 %v331, 0.0
  %v423 = vmax.f32 %v336, 0.0
  %v424 = vmax.f32 %v341, 0.0
  %v425 = vmax.f32 %v346, 0.0
  %v426 = vmax.f32 %v351, 0.0
  %v427 = vmax.f32 %v356, 0.0
  %v428 = vmax.f32 %v361, 0.0
  %v429 = vmax.f32 %v366, 0.0
  %v430 = vmax.f32 %v371, 0.0
  %v431 = vmax.f32 %v376, 0.0
  %v432 = vmax.f32 %v381, 0.0
  %v433 = vmax.f32 %v386, 0.0
  %v434 = vmax.f32 %v391, 0.0
  %v435 = vmax.f32 %v396, 0.0
  %v436 = vmax.f32 %v401, 0.0
  %v437 = vmax.f32 %v406, 0.0
  %v438 = vmax.f32 %v411, 0.0
  %v439 = vmax.f32 %v416, 0.0
  %v440 = vld [vmem:[%s2] sm:$0xff]
  %v441 = vld [vmem:[%s2 + $0x8] sm:$0xff]
  %v442 = vld [vmem:[%s2 + $0x10] sm:$0xff]
  %v443 = vld [vmem:[%s2 + $0x18] sm:$0xff]
  %v444 = vld [vmem:[%s2 + $0x20] sm:$0xf]
  %v445 = vld [vmem:[%s2 + $0x28] sm:$0xf]
  %v446 = vld [vmem:[%s3] sm:$0xff]
  %v447 = vld [vmem:[%s3 + $0x8] sm:$0xff]
  %v448 = vld [vmem:[%s3 + $0x10] sm:$0xf]
  %450 = vset.pattern.permute.xlu0 0
  %451 = vperm.xlu0 %450, %v446
  %v452 = vpop.permute.xlu0 %451
  %455 = vset.pattern.permute.xlu0 0
  %456 = vperm.xlu0 %455, %v447
  %v457 = vpop.permute.xlu0 %456
  %460 = vset.pattern.permute.xlu0 0
  %461 = vperm.xlu0 %460, %v448
  %v462 = vpop.permute.xlu0 %461
  %vm464 = vcmask 326656
  %v466 = vsel %vm464, %v441, 0
  %v469 = vsel %vm464, %v443, 0
  %v472 = vsel %vm464, %v445, 0
  %474 = vmatprep.subr.mxu0 0.0
  %475 = vmatpush1.msra.mxu0 %v434
  %476 = vmatprep.subr.mxu0 0.0
  %477 = vmatpush1.msra.mxu0 %v433
  %478 = vmatprep.subr.mxu0 0.0
  %479 = vmatpush1.msra.mxu0 %v432
  %480 = vmatprep.subr.mxu0 0.0
  %481 = vmatpush1.msra.mxu0 %v431
  %482 = vmatprep.subr.mxu0 0.0
  %483 = vmatpush1.msra.mxu0 %v430
  %484 = vmatprep.subr.mxu0 0.0
  %485 = vmatpush1.msra.mxu0 %v429
  %486 = vmatprep.subr.mxu0 0.0
  %487 = vmatpush1.msra.mxu0 %v428
  %488 = vmatprep.subr.mxu0 0.0
  %489 = vmatpush1.msra.mxu0 %v427
  %490 = vmatprep.subr.mxu0 0.0
  %491 = vmatpush1.msra.mxu0 %v426
  %492 = vmatprep.subr.mxu0 0.0
  %493 = vmatpush1.msra.mxu0 %v425
  %494 = vmatprep.subr.mxu0 0.0
  %495 = vmatpush1.msra.mxu0 %v424
  %496 = vmatprep.subr.mxu0 0.0
  %497 = vmatpush1.msra.mxu0 %v423
  %498 = vmatprep.subr.mxu0 0.0
  %499 = vmatpush1.msra.mxu0 %v422
  %500 = vmatprep.subr.mxu0 0.0
  %501 = vmatpush1.msra.mxu0 %v421
  %502 = vmatprep.subr.mxu0 0.0
  %503 = vmatpush1.msra.mxu0 %v420
  %504 = vmatprep.subr.mxu0 0.0
  %505 = vmatpush1.msra.mxu0 %v419
  %506 = vmatprep.subr.mxu0 0.0
  %507 = vmatpush2.msra.mxu0 0.0
  %508 = vmatprep.subr.mxu0 0.0
  %509 = vmatpush2.msra.mxu0 0.0
  %510 = vmatprep.subr.mxu0 0.0
  %511 = vmatpush2.msra.mxu0 0.0
  %512 = vmatprep.subr.mxu0 0.0
  %513 = vmatpush2.msra.mxu0 0.0
  %514 = vmatprep.subr.mxu0 0.0
  %515 = vmatpush2.msra.mxu0 0.0
  %516 = vmatprep.subr.mxu0 0.0
  %517 = vmatpush2.msra.mxu0 0.0
  %518 = vmatprep.subr.mxu0 0.0
  %519 = vmatpush2.msra.mxu0 0.0
  %520 = vmatprep.subr.mxu0 0.0
  %521 = vmatpush2.msra.mxu0 0.0
  %522 = vmatprep.subr.mxu0 0.0
  %523 = vmatpush2.msra.mxu0 0.0
  %524 = vmatprep.subr.mxu0 0.0
  %525 = vmatpush2.msra.mxu0 0.0
  %526 = vmatprep.subr.mxu0 0.0
  %527 = vmatpush2.msra.mxu0 0.0
  %528 = vmatprep.subr.mxu0 0.0
  %529 = vmatpush2.msra.mxu0 %v439
  %530 = vmatprep.subr.mxu0 0.0
  %531 = vmatpush2.msra.mxu0 %v438
  %532 = vmatprep.subr.mxu0 0.0
  %533 = vmatpush2.msra.mxu0 %v437
  %534 = vmatprep.subr.mxu0 0.0
  %535 = vmatpush2.msra.mxu0 %v436
  %536 = vmatprep.subr.mxu0 0.0
  %537 = vmatpush2.msra.mxu0 %v435
  %538 = vmatprep.mubr.f32.mxu0 %v466
  %539 = vmatmul.mubr.f32.gmra.mxu0 %v440
  %v540 = vpop.f32.mrf.mxu0
  %v541 = vadd.f32 %v452, %v540
  %v542 = vpop.f32.mrf.mxu0
  %543 = vmatprep.mubr.f32.mxu0 %v469
  %544 = vmatmul.mubr.f32.gmra.mxu0 %v442
  %v545 = vpop.f32.mrf.mxu0
  %v546 = vadd.f32 %v457, %v545
  %v547 = vpop.f32.mrf.mxu0
  %548 = vmatprep.mubr.f32.mxu0 %v472
  %549 = vmatmul.mubr.f32.gmra.mxu0 %v444
  %v550 = vpop.f32.mrf.mxu0
  %v551 = vadd.f32 %v462, %v550
  %v552 = vpop.f32.mrf.mxu0
  %553 = vdwg.mxu0
  %v554 = vmax.f32 %v541, 0.0
  %v555 = vmax.f32 %v546, 0.0
  %v556 = vmax.f32 %v551, 0.0
  %v557 = vld [vmem:[%s4] sm:$0x1]
  %v558 = vld [vmem:[#allocation2] sm:$0x1]
  %560 = vset.pattern.permute.xlu0 0
  %561 = vperm.xlu0 %560, %v558
  %v562 = vpop.permute.xlu0 %561
  %v564 = vlaneseq
  %v565 = vshrl.u32 %v564, 7
  %v566 = vsub.s32 0, %v565
  %v567 = vrot.slane %v562, %v566
  %vm568 = vcmask 162816
  %v570 = vsel %vm568, %v557, 0
  %vm572 = vcmask 1043456
  %v574 = vsel %vm572, %v556, 0
  %576 = vmatprep.subr.mxu0 0.0
  %577 = vmatpush1.msra.mxu0 0.0
  %578 = vmatprep.subr.mxu0 0.0
  %579 = vmatpush1.msra.mxu0 0.0
  %580 = vmatprep.subr.mxu0 0.0
  %581 = vmatpush1.msra.mxu0 0.0
  %582 = vmatprep.subr.mxu0 0.0
  %583 = vmatpush1.msra.mxu0 0.0
  %584 = vmatprep.subr.mxu0 0.0
  %585 = vmatpush1.msra.mxu0 0.0
  %586 = vmatprep.subr.mxu0 0.0
  %587 = vmatpush1.msra.mxu0 0.0
  %588 = vmatprep.subr.mxu0 0.0
  %589 = vmatpush1.msra.mxu0 0.0
  %590 = vmatprep.subr.mxu0 0.0
  %591 = vmatpush1.msra.mxu0 0.0
  %592 = vmatprep.subr.mxu0 0.0
  %593 = vmatpush1.msra.mxu0 0.0
  %594 = vmatprep.subr.mxu0 0.0
  %595 = vmatpush1.msra.mxu0 0.0
  %596 = vmatprep.subr.mxu0 0.0
  %597 = vmatpush1.msra.mxu0 0.0
  %598 = vmatprep.subr.mxu0 0.0
  %599 = vmatpush1.msra.mxu0 0.0
  %600 = vmatprep.subr.mxu0 0.0
  %601 = vmatpush1.msra.mxu0 0.0
  %602 = vmatprep.subr.mxu0 0.0
  %603 = vmatpush1.msra.mxu0 %v574
  %604 = vmatprep.subr.mxu0 0.0
  %605 = vmatpush1.msra.mxu0 %v555
  %606 = vmatprep.subr.mxu0 0.0
  %607 = vmatpush1.msra.mxu0 %v554
  %608 = vmatprep.subr.mxu0 0.0
  %609 = vmatpush2.msra.mxu0 0.0
  %610 = vmatprep.subr.mxu0 0.0
  %611 = vmatpush2.msra.mxu0 0.0
  %612 = vmatprep.subr.mxu0 0.0
  %613 = vmatpush2.msra.mxu0 0.0
  %614 = vmatprep.subr.mxu0 0.0
  %615 = vmatpush2.msra.mxu0 0.0
  %616 = vmatprep.subr.mxu0 0.0
  %617 = vmatpush2.msra.mxu0 0.0
  %618 = vmatprep.subr.mxu0 0.0
  %619 = vmatpush2.msra.mxu0 0.0
  %620 = vmatprep.subr.mxu0 0.0
  %621 = vmatpush2.msra.mxu0 0.0
  %622 = vmatprep.subr.mxu0 0.0
  %623 = vmatpush2.msra.mxu0 0.0
  %624 = vmatprep.subr.mxu0 0.0
  %625 = vmatpush2.msra.mxu0 0.0
  %626 = vmatprep.subr.mxu0 0.0
  %627 = vmatpush2.msra.mxu0 0.0
  %628 = vmatprep.subr.mxu0 0.0
  %629 = vmatpush2.msra.mxu0 0.0
  %630 = vmatprep.subr.mxu0 0.0
  %631 = vmatpush2.msra.mxu0 0.0
  %632 = vmatprep.subr.mxu0 0.0
  %633 = vmatpush2.msra.mxu0 0.0
  %634 = vmatprep.subr.mxu0 0.0
  %635 = vmatpush2.msra.mxu0 0.0
  %636 = vmatprep.subr.mxu0 0.0
  %637 = vmatpush2.msra.mxu0 0.0
  %638 = vmatprep.subr.mxu0 0.0
  %639 = vmatpush2.msra.mxu0 0.0
  %640 = vmatprep.mubr.f32.mxu0 0.0
  %641 = vmatmul.mubr.f32.gmra.mxu0 %v570
  %v642 = vpop.f32.mrf.mxu0
  %v643 = vadd.f32 %v567, %v642
  %v644 = vpop.f32.mrf.mxu0
  %645 = vdwg.mxu0
  %646 = vst [vmem:[%s7] sm:$0x1] %v643
  // Predicated region
  $region30: #{demo_forward.1} parent=0 // pred_check
    _
  $region31: #{demo_forward.1} parent=0 // pred_check_branch
    %648 = sbr.rel (0) target = $region33
  $region32: #{demo_forward.1} parent=0 // pred_region
    _
  $region33: #{demo_forward.1} parent=0 // pred_fallthru
    _
  // Predicated region
  $region34: #{demo_forward.1} parent=0 // pred_check
    _
  $region35: #{demo_forward.1} parent=0 // pred_check_branch
    %650 = sbr.rel (0) target = $region37
  $region36: #{demo_forward.1} parent=0 // pred_region
    _
  $region37: #{demo_forward.1} parent=0 // pred_fallthru
    _

</llo_original>
